<compile_context>
chip_gen: v7x
topology: tpu7x:2x2x1
jax: 0.10.0
libtpu: 0.0.40
codegen_flags: <defaults>
</compile_context>

<pallas_src>
import functools

import jax
import jax.numpy as jnp
from jax.experimental import pallas as pl
from jax.experimental.pallas import tpu as pltpu


def _round_up(x, m):
    return (x + m - 1) // m * m


def _plane_vmem_bytes(h, w, itemsize):
    """Conservative padded VMEM footprint of one (h, w) plane (per N row)."""
    return _round_up(h, 16) * _round_up(w, 128) * itemsize


def _tpu_vmem_capacity_bytes():
    try:
        info = pltpu.get_tpu_info()
        cap = getattr(info, "vmem_capacity_bytes", None)
        if cap:
            return int(cap)
    except Exception:
        pass
    return 64 * 1024 * 1024   # conservative default (v7x per-core)


def _maxpool_kernel(x_ref, o_ref, xp_ref, *, kernel_size, stride, ka, kb,
                    h, w, h_out, w_out):
    """x_ref: (nblk, H, W); o_ref: (nblk, Ho, Wo); xp_ref: VMEM (nblk, Hp, Wp)."""
    k = kernel_size
    hp = h + ka + kb
    wp = w + ka + kb
    nb = x_ref.shape[0]

    # ---- reflection pad: single materialization into the VMEM scratch.
    # Interior first, then thin row borders from x, then column borders read
    # from the already row-padded scratch (so corners are reflect-of-reflect,
    # matching torch ReflectionPad2d / jnp.pad(mode="reflect")).
    xp_ref[:, ka:ka + h, ka:ka + w] = x_ref[...]
    for p in range(1, ka + 1):                                   # top rows
        xp_ref[:, ka - p:ka - p + 1, ka:ka + w] = x_ref[:, p:p + 1, :]
    for p in range(1, kb + 1):                                   # bottom rows
        xp_ref[:, ka + h - 1 + p:ka + h + p, ka:ka + w] = \
            x_ref[:, h - 1 - p:h - p, :]
    for p in range(1, ka + 1):                                   # left cols
        xp_ref[:, :, ka - p:ka - p + 1] = xp_ref[:, :, ka + p:ka + p + 1]
    for p in range(1, kb + 1):                                   # right cols
        xp_ref[:, :, ka + w - 1 + p:ka + w + p] = \
            xp_ref[:, :, ka + w - 1 - p:ka + w - p]

    # ---- separable max: dense row max -> decimate once -> dense col max ->
    #      decimate once.  Only 2k maxes per element; strided slices appear
    #      at most twice (and only when stride > 1).
    hd = hp - k + 1                      # dense row-window positions
    rmax = xp_ref[:, 0:hd, :]
    for dy in range(1, k):               # static -> fully unrolled
        rmax = jnp.maximum(rmax, xp_ref[:, dy:dy + hd, :])
    if stride > 1:
        rmax = jax.lax.slice(rmax, (0, 0, 0),
                             (nb, (h_out - 1) * stride + 1, wp),
                             (1, stride, 1))
    # rmax: (nb, h_out, wp)

    wd = wp - k + 1                      # dense col-window positions
    cmax = jax.lax.slice(rmax, (0, 0, 0), (nb, h_out, wd))
    for dx in range(1, k):
        cmax = jnp.maximum(
            cmax, jax.lax.slice(rmax, (0, 0, dx), (nb, h_out, dx + wd)))
    if stride > 1:
        cmax = jax.lax.slice(cmax, (0, 0, 0),
                             (nb, h_out, (w_out - 1) * stride + 1),
                             (1, 1, stride))

    o_ref[...] = cmax


def maxpool2d_layer(features, kernel_size, stride, num_sim_matrices):
    """features: [B, S, C, H, W] with S == num_sim_matrices."""
    B, S, C, H, W = features.shape
    assert S == num_sim_matrices
    ka = kernel_size // 2
    kb = ka - 1 if kernel_size % 2 == 0 else ka
    # Same constraint as torch ReflectionPad2d: pad must be < spatial dims.
    assert ka < H and ka < W, (
        "reflection pad (ka=%d, kb=%d) must be smaller than H=%d, W=%d"
        % (ka, kb, H, W))

    Hp, Wp = H + ka + kb, W + ka + kb
    Ho = (Hp - kernel_size) // stride + 1
    Wo = (Wp - kernel_size) // stride + 1

    N = B * S * C
    dt = features.dtype
    itemsize = jnp.dtype(dt).itemsize

    # Natural layout: (N, H, W) is a metadata-only view of (B,S,C,H,W);
    # no transposes / no lane padding around the pallas_call.
    x = features.reshape(N, H, W)

    # ---- generation-aware block sizing -------------------------------------
    vmem_cap = _tpu_vmem_capacity_bytes()
    # Per-N-row VMEM: 2x input (double buffer) + 2x output + padded scratch
    # plus ~3 tile-sized temporaries inside the separable-max pipeline.
    per_n = (2 * _plane_vmem_bytes(H, W, itemsize)
             + 2 * _plane_vmem_bytes(Ho, Wo, itemsize)
             + 4 * _plane_vmem_bytes(Hp, Wp, itemsize))
    vmem_budget = vmem_cap // 2
    nblk_vmem = max(1, vmem_budget // per_n)
    # ~4 MiB input tiles on 128 MiB-VMEM chips (v5e/v6e), ~1 MiB on v7x.
    target_tile = (4 << 20) if vmem_cap >= (96 << 20) else (1 << 20)
    nblk_target = max(1, target_tile // max(H * W * itemsize, 1))
    nblk = int(min(N, nblk_vmem, nblk_target))

    grid_n = pl.cdiv(N, nblk)
    # Keep >= 2 grid steps only when each half still carries >= 1 MiB of
    # input (lets v7x shard across its 2 TCs without shrinking tiles below
    # the good roofline regime on single-TC v5e/v6e).
    if grid_n < 2 and N > 1 and (N // 2) * H * W * itemsize >= (1 << 20):
        nblk = pl.cdiv(N, 2)
        grid_n = pl.cdiv(N, nblk)

    kernel = functools.partial(
        _maxpool_kernel, kernel_size=kernel_size, stride=stride,
        ka=ka, kb=kb, h=H, w=W, h_out=Ho, w_out=Wo)

    cost = pl.CostEstimate(
        flops=2 * kernel_size * Ho * Wo * N,           # separable: ~2k maxes/elem
        transcendentals=0,
        bytes_accessed=(H * W + Ho * Wo) * N * itemsize)

    vmem_limit = int(min(vmem_cap * 0.9, 100 << 20))
    vmem_limit = max(vmem_limit, 32 << 20)

    out = pl.pallas_call(
        kernel,
        out_shape=jax.ShapeDtypeStruct((N, Ho, Wo), dt),
        grid_spec=pltpu.PrefetchScalarGridSpec(
            num_scalar_prefetch=0,
            grid=(grid_n,),
            # Last two block dims equal the full array dims -> (8,128)
            # constraint is satisfied; leading dim nblk is unconstrained and
            # contiguous in HBM (clean DMA). Ragged final block is masked.
            in_specs=[pl.BlockSpec((nblk, H, W), lambda i: (i, 0, 0))],
            out_specs=pl.BlockSpec((nblk, Ho, Wo), lambda i: (i, 0, 0)),
            scratch_shapes=[pltpu.VMEM((nblk, Hp, Wp), dt)],
        ),
        compiler_params=pltpu.CompilerParams(
            dimension_semantics=("parallel",),
            vmem_limit_bytes=vmem_limit),
        cost_estimate=cost,
    )(x)

    return out.reshape(B, S, C, Ho, Wo)   # metadata-only reshape


def _reference(features, kernel_size, stride):
    """Pure-JAX reference (reflect pad + reduce_window max) for verification."""
    ka = kernel_size // 2
    kb = ka - 1 if kernel_size % 2 == 0 else ka
    x = jnp.pad(features, ((0, 0), (0, 0), (0, 0), (ka, kb), (ka, kb)),
                mode="reflect")
    return jax.lax.reduce_window(
        x, -jnp.inf, jax.lax.max,
        window_dimensions=(1, 1, 1, kernel_size, kernel_size),
        window_strides=(1, 1, 1, stride, stride),
        padding="VALID")


if __name__ == "__main__":
    kernel_size = 3
    stride = 1
    num_sim_matrices = 2
    B, C, H, W = 2, 4, 16, 16

    key = jax.random.PRNGKey(0)
    features = jax.random.normal(
        key, (B, num_sim_matrices, C, H, W), dtype=jnp.float32)

    out = maxpool2d_layer(features, kernel_size, stride, num_sim_matrices)
    out = jax.block_until_ready(out)

    ref = _reference(features, kernel_size, stride)
    assert out.shape == ref.shape, (out.shape, ref.shape)
    assert jnp.allclose(out, ref, atol=1e-6), "mismatch vs reference"

    print("KERNEL_OK")
</pallas_src>

<mosaic_0001>
module attributes {stable_mosaic.version = 11 : i64} {
  func.func @_maxpool_kernel(%arg0: i32, %arg1: memref<16x16x16xf32, #tpu.memory_space<vmem>>, %arg2: memref<16x16x16xf32, #tpu.memory_space<vmem>>, %arg3: memref<16x18x18xf32, #tpu.memory_space<vmem>>) attributes {dimension_semantics = [#tpu.dimension_semantics<parallel>], iteration_bounds = array<i64: 1>, scalar_prefetch = 0 : i64, scratch_operands = 1 : i64, tpu.core_type = #tpu.core_type<tc>, window_params = [{transform_indices = @transform_0, window_bounds = array<i64: 16, 16, 16>}, {transform_indices = @transform_1, window_bounds = array<i64: 16, 16, 16>}]} {
    %c0 = arith.constant 0 : index
    %c0_0 = arith.constant 0 : index
    %c0_1 = arith.constant 0 : index
    %0 = vector.load %arg1[%c0, %c0_0, %c0_1] : memref<16x16x16xf32, #tpu.memory_space<vmem>>, vector<16x16x16xf32>
    %c0_2 = arith.constant 0 : index
    %c1 = arith.constant 1 : index
    %c1_3 = arith.constant 1 : index
    %1 = vector.load %arg3[%c0_2, %c1, %c1_3] : memref<16x18x18xf32, #tpu.memory_space<vmem>>, vector<16x16x16xf32>
    tpu.vector_store %arg3[%c0_2, %c1, %c1_3], %0 {strides = array<i32>} : memref<16x18x18xf32, #tpu.memory_space<vmem>>, vector<16x16x16xf32>,
    %c0_4 = arith.constant 0 : index
    %c1_5 = arith.constant 1 : index
    %c0_6 = arith.constant 0 : index
    %2 = vector.load %arg1[%c0_4, %c1_5, %c0_6] : memref<16x16x16xf32, #tpu.memory_space<vmem>>, vector<16x1x16xf32>
    %c0_7 = arith.constant 0 : index
    %c0_8 = arith.constant 0 : index
    %c1_9 = arith.constant 1 : index
    %3 = vector.load %arg3[%c0_7, %c0_8, %c1_9] : memref<16x18x18xf32, #tpu.memory_space<vmem>>, vector<16x1x16xf32>
    tpu.vector_store %arg3[%c0_7, %c0_8, %c1_9], %2 {strides = array<i32>} : memref<16x18x18xf32, #tpu.memory_space<vmem>>, vector<16x1x16xf32>,
    %c0_10 = arith.constant 0 : index
    %c14 = arith.constant 14 : index
    %c0_11 = arith.constant 0 : index
    %4 = vector.load %arg1[%c0_10, %c14, %c0_11] : memref<16x16x16xf32, #tpu.memory_space<vmem>>, vector<16x1x16xf32>
    %c0_12 = arith.constant 0 : index
    %c17 = arith.constant 17 : index
    %c1_13 = arith.constant 1 : index
    %5 = vector.load %arg3[%c0_12, %c17, %c1_13] : memref<16x18x18xf32, #tpu.memory_space<vmem>>, vector<16x1x16xf32>
    tpu.vector_store %arg3[%c0_12, %c17, %c1_13], %4 {strides = array<i32>} : memref<16x18x18xf32, #tpu.memory_space<vmem>>, vector<16x1x16xf32>,
    %c0_14 = arith.constant 0 : index
    %c0_15 = arith.constant 0 : index
    %c2 = arith.constant 2 : index
    %6 = vector.load %arg3[%c0_14, %c0_15, %c2] : memref<16x18x18xf32, #tpu.memory_space<vmem>>, vector<16x18x1xf32>
    %c0_16 = arith.constant 0 : index
    %c0_17 = arith.constant 0 : index
    %c0_18 = arith.constant 0 : index
    %7 = vector.load %arg3[%c0_16, %c0_17, %c0_18] : memref<16x18x18xf32, #tpu.memory_space<vmem>>, vector<16x18x1xf32>
    tpu.vector_store %arg3[%c0_16, %c0_17, %c0_18], %6 {strides = array<i32>} : memref<16x18x18xf32, #tpu.memory_space<vmem>>, vector<16x18x1xf32>,
    %c0_19 = arith.constant 0 : index
    %c0_20 = arith.constant 0 : index
    %c15 = arith.constant 15 : index
    %8 = vector.load %arg3[%c0_19, %c0_20, %c15] : memref<16x18x18xf32, #tpu.memory_space<vmem>>, vector<16x18x1xf32>
    %c0_21 = arith.constant 0 : index
    %c0_22 = arith.constant 0 : index
    %c17_23 = arith.constant 17 : index
    %9 = vector.load %arg3[%c0_21, %c0_22, %c17_23] : memref<16x18x18xf32, #tpu.memory_space<vmem>>, vector<16x18x1xf32>
    tpu.vector_store %arg3[%c0_21, %c0_22, %c17_23], %8 {strides = array<i32>} : memref<16x18x18xf32, #tpu.memory_space<vmem>>, vector<16x18x1xf32>,
    %c0_24 = arith.constant 0 : index
    %c0_25 = arith.constant 0 : index
    %c0_26 = arith.constant 0 : index
    %10 = vector.load %arg3[%c0_24, %c0_25, %c0_26] : memref<16x18x18xf32, #tpu.memory_space<vmem>>, vector<16x16x18xf32>
    %c0_27 = arith.constant 0 : index
    %c1_28 = arith.constant 1 : index
    %c0_29 = arith.constant 0 : index
    %11 = vector.load %arg3[%c0_27, %c1_28, %c0_29] : memref<16x18x18xf32, #tpu.memory_space<vmem>>, vector<16x16x18xf32>
    %12 = arith.maximumf %10, %11 : vector<16x16x18xf32>
    %c0_30 = arith.constant 0 : index
    %c2_31 = arith.constant 2 : index
    %c0_32 = arith.constant 0 : index
    %13 = vector.load %arg3[%c0_30, %c2_31, %c0_32] : memref<16x18x18xf32, #tpu.memory_space<vmem>>, vector<16x16x18xf32>
    %14 = arith.maximumf %12, %13 : vector<16x16x18xf32>
    %15 = vector.extract_strided_slice %14 {offsets = [0, 0, 0], sizes = [16, 16, 16], strides = [1, 1, 1]} : vector<16x16x18xf32> to vector<16x16x16xf32>
    %16 = vector.extract_strided_slice %14 {offsets = [0, 0, 1], sizes = [16, 16, 16], strides = [1, 1, 1]} : vector<16x16x18xf32> to vector<16x16x16xf32>
    %17 = arith.maximumf %15, %16 : vector<16x16x16xf32>
    %18 = vector.extract_strided_slice %14 {offsets = [0, 0, 2], sizes = [16, 16, 16], strides = [1, 1, 1]} : vector<16x16x18xf32> to vector<16x16x16xf32>
    %19 = arith.maximumf %17, %18 : vector<16x16x16xf32>
    %c0_33 = arith.constant 0 : index
    %c0_34 = arith.constant 0 : index
    %c0_35 = arith.constant 0 : index
    %20 = vector.load %arg2[%c0_33, %c0_34, %c0_35] : memref<16x16x16xf32, #tpu.memory_space<vmem>>, vector<16x16x16xf32>
    tpu.vector_store %arg2[%c0_33, %c0_34, %c0_35], %19 {strides = array<i32>} : memref<16x16x16xf32, #tpu.memory_space<vmem>>, vector<16x16x16xf32>,
    return
  }
  func.func @transform_0(%arg0: i32) -> (i32, i32, i32) {
    %c0_i32 = arith.constant 0 : i32
    %c0_i32_0 = arith.constant 0 : i32
    %c0_i32_1 = arith.constant 0 : i32
    return %arg0, %c0_i32, %c0_i32_0 : i32, i32, i32
  }
  func.func @transform_1(%arg0: i32) -> (i32, i32, i32) {
    %c0_i32 = arith.constant 0 : i32
    %c0_i32_0 = arith.constant 0 : i32
    %c0_i32_1 = arith.constant 0 : i32
    return %arg0, %c0_i32, %c0_i32_0 : i32, i32, i32
  }
}

</mosaic_0001>

<llo_original>
// kernel: tpu_custom_call.1
$region0: #{tpu_custom_call.1}
  #allocation0 [shape = 'u32[]', space=smem, size = 0x4, offset = 0x4, fixed_abs, tag = 'smem constant byte address 0x4 - core index']
  #allocation1 [shape = 'u32[144,128]{1,0:T(1,128)}', space=vmem, size = 0x12000, scoped, tag = 'internal scratch']
  #allocation2 [shape = 'f32[16,18,18]{2,1,0:T(8,128)}', space=vmem, size = 0x30000, scoped, tag = 'scratch operand']
  %s0 = inlined_call_operand.hbm [shape: f32[16,16,16], index: 0, kind: input, shape index: {}]
  %s1 = inlined_call_operand.hbm [shape: f32[16,16,16], index: 1, kind: output, shape index: {}]
  %s2 = sld [smem:[#allocation0]]
  $region18: #{tpu_custom_call.1} parent=0
    _
  %s4 = ssub.s32 1, %s2
  %s5 = scalar_select 0, %s4, %s2
  $region1: #{tpu_custom_call.1} parent=0
    #allocation3 [shape = 'u8[131072]{0}', space=vmem, size = 0x20000, scoped, tag = 'input window, operand 0, single buffered']
    #allocation4 [shape = 's32[1]{0}', space=sflag, size = 0x4, scoped, tag = 'scoped memory for tpu_custom_call.1']
    #allocation5 [shape = 's32[1]{0}', space=sflag, size = 0x4, scoped, tag = 'scoped memory for tpu_custom_call.1']
    #allocation6 [shape = 'u8[131072]{0}', space=vmem, size = 0x20000, scoped, tag = 'output window, operand 0, single buffered']
    %6 = vsyncpa [#allocation4], 0
    %7 = vsyncpa [#allocation5], 0
    // Predicated region
    $region2: #{tpu_custom_call.1} parent=1 // pred_check
      _
    $region3: #{tpu_custom_call.1} parent=1 // pred_check_branch
      %9 = sbr.rel (0) target = $region5
    $region4: #{tpu_custom_call.1} parent=1 // pred_region
      %s11 = ssub.s32 4096, 4096
      %12 = vsyncadd [#allocation4], %s11
      %s13 = sshll.u32 [#allocation3], 4
      %s14 = int_to_ptr.vmem [resolvable:$true] %s13
      %19 = dma.hbm_to_vmem [thread:$0]  %s0, 4096, %s14, [#allocation4], 128, 128, 8
    $region5: #{tpu_custom_call.1} parent=1 // pred_fallthru
      _
    // Predicated region
    $region6: #{tpu_custom_call.1} parent=1 // pred_check
      _
    $region7: #{tpu_custom_call.1} parent=1 // pred_check_branch
      %21 = sbr.rel (0) target = $region9
    $region8: #{tpu_custom_call.1} parent=1 // pred_region
      %22 = dma.done [#allocation4], 4096
    $region9: #{tpu_custom_call.1} parent=1 // pred_fallthru
      _
    %v23 = vld [vmem:[#allocation3] sm:$0xff]
    %v24 = vld [vmem:[#allocation3 + $0x8] sm:$0xff]
    %v25 = vld [vmem:[#allocation3 + $0x10] sm:$0xff]
    %v26 = vld [vmem:[#allocation3 + $0x18] sm:$0xff]
    %v27 = vld [vmem:[#allocation3 + $0x20] sm:$0xff]
    %v28 = vld [vmem:[#allocation3 + $0x28] sm:$0xff]
    %v29 = vld [vmem:[#allocation3 + $0x30] sm:$0xff]
    %v30 = vld [vmem:[#allocation3 + $0x38] sm:$0xff]
    %v31 = vld [vmem:[#allocation3 + $0x40] sm:$0xff]
    %v32 = vld [vmem:[#allocation3 + $0x48] sm:$0xff]
    %v33 = vld [vmem:[#allocation3 + $0x50] sm:$0xff]
    %v34 = vld [vmem:[#allocation3 + $0x58] sm:$0xff]
    %v35 = vld [vmem:[#allocation3 + $0x60] sm:$0xff]
    %v36 = vld [vmem:[#allocation3 + $0x68] sm:$0xff]
    %v37 = vld [vmem:[#allocation3 + $0x70] sm:$0xff]
    %v38 = vld [vmem:[#allocation3 + $0x78] sm:$0xff]
    %v39 = vld [vmem:[#allocation3 + $0x80] sm:$0xff]
    %v40 = vld [vmem:[#allocation3 + $0x88] sm:$0xff]
    %v41 = vld [vmem:[#allocation3 + $0x90] sm:$0xff]
    %v42 = vld [vmem:[#allocation3 + $0x98] sm:$0xff]
    %v43 = vld [vmem:[#allocation3 + $0xa0] sm:$0xff]
    %v44 = vld [vmem:[#allocation3 + $0xa8] sm:$0xff]
    %v45 = vld [vmem:[#allocation3 + $0xb0] sm:$0xff]
    %v46 = vld [vmem:[#allocation3 + $0xb8] sm:$0xff]
    %v47 = vld [vmem:[#allocation3 + $0xc0] sm:$0xff]
    %v48 = vld [vmem:[#allocation3 + $0xc8] sm:$0xff]
    %v49 = vld [vmem:[#allocation3 + $0xd0] sm:$0xff]
    %v50 = vld [vmem:[#allocation3 + $0xd8] sm:$0xff]
    %v51 = vld [vmem:[#allocation3 + $0xe0] sm:$0xff]
    %v52 = vld [vmem:[#allocation3 + $0xe8] sm:$0xff]
    %v53 = vld [vmem:[#allocation3 + $0xf0] sm:$0xff]
    %v54 = vld [vmem:[#allocation3 + $0xf8] sm:$0xff]
    %87 = vrot.lane.b32.xlu0 %v23, 1
    %v88 = vpop.permute.xlu0 %87
    %89 = vrot.lane.b32.xlu0 %v24, 1
    %v90 = vpop.permute.xlu0 %89
    %91 = vrot.lane.b32.xlu0 %v25, 1
    %v92 = vpop.permute.xlu0 %91
    %93 = vrot.lane.b32.xlu0 %v26, 1
    %v94 = vpop.permute.xlu0 %93
    %95 = vrot.lane.b32.xlu0 %v27, 1
    %v96 = vpop.permute.xlu0 %95
    %97 = vrot.lane.b32.xlu0 %v28, 1
    %v98 = vpop.permute.xlu0 %97
    %99 = vrot.lane.b32.xlu0 %v29, 1
    %v100 = vpop.permute.xlu0 %99
    %101 = vrot.lane.b32.xlu0 %v30, 1
    %v102 = vpop.permute.xlu0 %101
    %103 = vrot.lane.b32.xlu0 %v31, 1
    %v104 = vpop.permute.xlu0 %103
    %105 = vrot.lane.b32.xlu0 %v32, 1
    %v106 = vpop.permute.xlu0 %105
    %107 = vrot.lane.b32.xlu0 %v33, 1
    %v108 = vpop.permute.xlu0 %107
    %109 = vrot.lane.b32.xlu0 %v34, 1
    %v110 = vpop.permute.xlu0 %109
    %111 = vrot.lane.b32.xlu0 %v35, 1
    %v112 = vpop.permute.xlu0 %111
    %113 = vrot.lane.b32.xlu0 %v36, 1
    %v114 = vpop.permute.xlu0 %113
    %115 = vrot.lane.b32.xlu0 %v37, 1
    %v116 = vpop.permute.xlu0 %115
    %117 = vrot.lane.b32.xlu0 %v38, 1
    %v118 = vpop.permute.xlu0 %117
    %119 = vrot.lane.b32.xlu0 %v39, 1
    %v120 = vpop.permute.xlu0 %119
    %121 = vrot.lane.b32.xlu0 %v40, 1
    %v122 = vpop.permute.xlu0 %121
    %123 = vrot.lane.b32.xlu0 %v41, 1
    %v124 = vpop.permute.xlu0 %123
    %125 = vrot.lane.b32.xlu0 %v42, 1
    %v126 = vpop.permute.xlu0 %125
    %127 = vrot.lane.b32.xlu0 %v43, 1
    %v128 = vpop.permute.xlu0 %127
    %129 = vrot.lane.b32.xlu0 %v44, 1
    %v130 = vpop.permute.xlu0 %129
    %131 = vrot.lane.b32.xlu0 %v45, 1
    %v132 = vpop.permute.xlu0 %131
    %133 = vrot.lane.b32.xlu0 %v46, 1
    %v134 = vpop.permute.xlu0 %133
    %135 = vrot.lane.b32.xlu0 %v47, 1
    %v136 = vpop.permute.xlu0 %135
    %137 = vrot.lane.b32.xlu0 %v48, 1
    %v138 = vpop.permute.xlu0 %137
    %139 = vrot.lane.b32.xlu0 %v49, 1
    %v140 = vpop.permute.xlu0 %139
    %141 = vrot.lane.b32.xlu0 %v50, 1
    %v142 = vpop.permute.xlu0 %141
    %143 = vrot.lane.b32.xlu0 %v51, 1
    %v144 = vpop.permute.xlu0 %143
    %145 = vrot.lane.b32.xlu0 %v52, 1
    %v146 = vpop.permute.xlu0 %145
    %147 = vrot.lane.b32.xlu0 %v53, 1
    %v148 = vpop.permute.xlu0 %147
    %149 = vrot.lane.b32.xlu0 %v54, 1
    %v150 = vpop.permute.xlu0 %149
    %vm183 = vcmask 138248
    %184 = vst.msk [vmem:[#allocation2 + $0x1] sm:$0xff] %vm183, %v88
    %185 = vst.msk [vmem:[#allocation2 + $0x9] sm:$0xff] %vm183, %v90
    %186 = vst.msk [vmem:[#allocation2 + $0x19] sm:$0xff] %vm183, %v92
    %187 = vst.msk [vmem:[#allocation2 + $0x21] sm:$0xff] %vm183, %v94
    %188 = vst.msk [vmem:[#allocation2 + $0x31] sm:$0xff] %vm183, %v96
    %189 = vst.msk [vmem:[#allocation2 + $0x39] sm:$0xff] %vm183, %v98
    %190 = vst.msk [vmem:[#allocation2 + $0x49] sm:$0xff] %vm183, %v100
    %191 = vst.msk [vmem:[#allocation2 + $0x51] sm:$0xff] %vm183, %v102
    %192 = vst.msk [vmem:[#allocation2 + $0x61] sm:$0xff] %vm183, %v104
    %193 = vst.msk [vmem:[#allocation2 + $0x69] sm:$0xff] %vm183, %v106
    %194 = vst.msk [vmem:[#allocation2 + $0x79] sm:$0xff] %vm183, %v108
    %195 = vst.msk [vmem:[#allocation2 + $0x81] sm:$0xff] %vm183, %v110
    %196 = vst.msk [vmem:[#allocation2 + $0x91] sm:$0xff] %vm183, %v112
    %197 = vst.msk [vmem:[#allocation2 + $0x99] sm:$0xff] %vm183, %v114
    %198 = vst.msk [vmem:[#allocation2 + $0xa9] sm:$0xff] %vm183, %v116
    %199 = vst.msk [vmem:[#allocation2 + $0xb1] sm:$0xff] %vm183, %v118
    %200 = vst.msk [vmem:[#allocation2 + $0xc1] sm:$0xff] %vm183, %v120
    %201 = vst.msk [vmem:[#allocation2 + $0xc9] sm:$0xff] %vm183, %v122
    %202 = vst.msk [vmem:[#allocation2 + $0xd9] sm:$0xff] %vm183, %v124
    %203 = vst.msk [vmem:[#allocation2 + $0xe1] sm:$0xff] %vm183, %v126
    %204 = vst.msk [vmem:[#allocation2 + $0xf1] sm:$0xff] %vm183, %v128
    %205 = vst.msk [vmem:[#allocation2 + $0xf9] sm:$0xff] %vm183, %v130
    %206 = vst.msk [vmem:[#allocation2 + $0x109] sm:$0xff] %vm183, %v132
    %207 = vst.msk [vmem:[#allocation2 + $0x111] sm:$0xff] %vm183, %v134
    %208 = vst.msk [vmem:[#allocation2 + $0x121] sm:$0xff] %vm183, %v136
    %209 = vst.msk [vmem:[#allocation2 + $0x129] sm:$0xff] %vm183, %v138
    %210 = vst.msk [vmem:[#allocation2 + $0x139] sm:$0xff] %vm183, %v140
    %211 = vst.msk [vmem:[#allocation2 + $0x141] sm:$0xff] %vm183, %v142
    %212 = vst.msk [vmem:[#allocation2 + $0x151] sm:$0xff] %vm183, %v144
    %213 = vst.msk [vmem:[#allocation2 + $0x159] sm:$0xff] %vm183, %v146
    %214 = vst.msk [vmem:[#allocation2 + $0x169] sm:$0xff] %vm183, %v148
    %215 = vst.msk [vmem:[#allocation2 + $0x171] sm:$0xff] %vm183, %v150
    %v216 = vld [vmem:[#allocation3 + $0x1] sm:$0x1]
    %v217 = vld [vmem:[#allocation3 + $0x11] sm:$0x1]
    %v218 = vld [vmem:[#allocation3 + $0x21] sm:$0x1]
    %v219 = vld [vmem:[#allocation3 + $0x31] sm:$0x1]
    %v220 = vld [vmem:[#allocation3 + $0x41] sm:$0x1]
    %v221 = vld [vmem:[#allocation3 + $0x51] sm:$0x1]
    %v222 = vld [vmem:[#allocation3 + $0x61] sm:$0x1]
    %v223 = vld [vmem:[#allocation3 + $0x71] sm:$0x1]
    %v224 = vld [vmem:[#allocation3 + $0x81] sm:$0x1]
    %v225 = vld [vmem:[#allocation3 + $0x91] sm:$0x1]
    %v226 = vld [vmem:[#allocation3 + $0xa1] sm:$0x1]
    %v227 = vld [vmem:[#allocation3 + $0xb1] sm:$0x1]
    %v228 = vld [vmem:[#allocation3 + $0xc1] sm:$0x1]
    %v229 = vld [vmem:[#allocation3 + $0xd1] sm:$0x1]
    %v230 = vld [vmem:[#allocation3 + $0xe1] sm:$0x1]
    %v231 = vld [vmem:[#allocation3 + $0xf1] sm:$0x1]
    %248 = vrot.lane.b32.xlu0 %v216, 1
    %v249 = vpop.permute.xlu0 %248
    %250 = vrot.lane.b32.xlu0 %v217, 1
    %v251 = vpop.permute.xlu0 %250
    %252 = vrot.lane.b32.xlu0 %v218, 1
    %v253 = vpop.permute.xlu0 %252
    %254 = vrot.lane.b32.xlu0 %v219, 1
    %v255 = vpop.permute.xlu0 %254
    %256 = vrot.lane.b32.xlu0 %v220, 1
    %v257 = vpop.permute.xlu0 %256
    %258 = vrot.lane.b32.xlu0 %v221, 1
    %v259 = vpop.permute.xlu0 %258
    %260 = vrot.lane.b32.xlu0 %v222, 1
    %v261 = vpop.permute.xlu0 %260
    %262 = vrot.lane.b32.xlu0 %v223, 1
    %v263 = vpop.permute.xlu0 %262
    %264 = vrot.lane.b32.xlu0 %v224, 1
    %v265 = vpop.permute.xlu0 %264
    %266 = vrot.lane.b32.xlu0 %v225, 1
    %v267 = vpop.permute.xlu0 %266
    %268 = vrot.lane.b32.xlu0 %v226, 1
    %v269 = vpop.permute.xlu0 %268
    %270 = vrot.lane.b32.xlu0 %v227, 1
    %v271 = vpop.permute.xlu0 %270
    %272 = vrot.lane.b32.xlu0 %v228, 1
    %v273 = vpop.permute.xlu0 %272
    %274 = vrot.lane.b32.xlu0 %v229, 1
    %v275 = vpop.permute.xlu0 %274
    %276 = vrot.lane.b32.xlu0 %v230, 1
    %v277 = vpop.permute.xlu0 %276
    %278 = vrot.lane.b32.xlu0 %v231, 1
    %v279 = vpop.permute.xlu0 %278
    %vm296 = vcmask 131080
    %297 = vst.msk [vmem:[#allocation2] sm:$0x1] %vm296, %v249
    %298 = vst.msk [vmem:[#allocation2 + $0x18] sm:$0x1] %vm296, %v251
    %299 = vst.msk [vmem:[#allocation2 + $0x30] sm:$0x1] %vm296, %v253
    %300 = vst.msk [vmem:[#allocation2 + $0x48] sm:$0x1] %vm296, %v255
    %301 = vst.msk [vmem:[#allocation2 + $0x60] sm:$0x1] %vm296, %v257
    %302 = vst.msk [vmem:[#allocation2 + $0x78] sm:$0x1] %vm296, %v259
    %303 = vst.msk [vmem:[#allocation2 + $0x90] sm:$0x1] %vm296, %v261
    %304 = vst.msk [vmem:[#allocation2 + $0xa8] sm:$0x1] %vm296, %v263
    %305 = vst.msk [vmem:[#allocation2 + $0xc0] sm:$0x1] %vm296, %v265
    %306 = vst.msk [vmem:[#allocation2 + $0xd8] sm:$0x1] %vm296, %v267
    %307 = vst.msk [vmem:[#allocation2 + $0xf0] sm:$0x1] %vm296, %v269
    %308 = vst.msk [vmem:[#allocation2 + $0x108] sm:$0x1] %vm296, %v271
    %309 = vst.msk [vmem:[#allocation2 + $0x120] sm:$0x1] %vm296, %v273
    %310 = vst.msk [vmem:[#allocation2 + $0x138] sm:$0x1] %vm296, %v275
    %311 = vst.msk [vmem:[#allocation2 + $0x150] sm:$0x1] %vm296, %v277
    %312 = vst.msk [vmem:[#allocation2 + $0x168] sm:$0x1] %vm296, %v279
    %v313 = vld [vmem:[#allocation3 + $0xe] sm:$0x1]
    %v314 = vld [vmem:[#allocation3 + $0x1e] sm:$0x1]
    %v315 = vld [vmem:[#allocation3 + $0x2e] sm:$0x1]
    %v316 = vld [vmem:[#allocation3 + $0x3e] sm:$0x1]
    %v317 = vld [vmem:[#allocation3 + $0x4e] sm:$0x1]
    %v318 = vld [vmem:[#allocation3 + $0x5e] sm:$0x1]
    %v319 = vld [vmem:[#allocation3 + $0x6e] sm:$0x1]
    %v320 = vld [vmem:[#allocation3 + $0x7e] sm:$0x1]
    %v321 = vld [vmem:[#allocation3 + $0x8e] sm:$0x1]
    %v322 = vld [vmem:[#allocation3 + $0x9e] sm:$0x1]
    %v323 = vld [vmem:[#allocation3 + $0xae] sm:$0x1]
    %v324 = vld [vmem:[#allocation3 + $0xbe] sm:$0x1]
    %v325 = vld [vmem:[#allocation3 + $0xce] sm:$0x1]
    %v326 = vld [vmem:[#allocation3 + $0xde] sm:$0x1]
    %v327 = vld [vmem:[#allocation3 + $0xee] sm:$0x1]
    %v328 = vld [vmem:[#allocation3 + $0xfe] sm:$0x1]
    %345 = vrot.lane.b32.xlu0 %v313, 1
    %v346 = vpop.permute.xlu0 %345
    %347 = vrot.lane.b32.xlu0 %v314, 1
    %v348 = vpop.permute.xlu0 %347
    %349 = vrot.lane.b32.xlu0 %v315, 1
    %v350 = vpop.permute.xlu0 %349
    %351 = vrot.lane.b32.xlu0 %v316, 1
    %v352 = vpop.permute.xlu0 %351
    %353 = vrot.lane.b32.xlu0 %v317, 1
    %v354 = vpop.permute.xlu0 %353
    %355 = vrot.lane.b32.xlu0 %v318, 1
    %v356 = vpop.permute.xlu0 %355
    %357 = vrot.lane.b32.xlu0 %v319, 1
    %v358 = vpop.permute.xlu0 %357
    %359 = vrot.lane.b32.xlu0 %v320, 1
    %v360 = vpop.permute.xlu0 %359
    %361 = vrot.lane.b32.xlu0 %v321, 1
    %v362 = vpop.permute.xlu0 %361
    %363 = vrot.lane.b32.xlu0 %v322, 1
    %v364 = vpop.permute.xlu0 %363
    %365 = vrot.lane.b32.xlu0 %v323, 1
    %v366 = vpop.permute.xlu0 %365
    %367 = vrot.lane.b32.xlu0 %v324, 1
    %v368 = vpop.permute.xlu0 %367
    %369 = vrot.lane.b32.xlu0 %v325, 1
    %v370 = vpop.permute.xlu0 %369
    %371 = vrot.lane.b32.xlu0 %v326, 1
    %v372 = vpop.permute.xlu0 %371
    %373 = vrot.lane.b32.xlu0 %v327, 1
    %v374 = vpop.permute.xlu0 %373
    %375 = vrot.lane.b32.xlu0 %v328, 1
    %v376 = vpop.permute.xlu0 %375
    %393 = vst.msk [vmem:[#allocation2 + $0x11] sm:$0x1] %vm296, %v346
    %394 = vst.msk [vmem:[#allocation2 + $0x29] sm:$0x1] %vm296, %v348
    %395 = vst.msk [vmem:[#allocation2 + $0x41] sm:$0x1] %vm296, %v350
    %396 = vst.msk [vmem:[#allocation2 + $0x59] sm:$0x1] %vm296, %v352
    %397 = vst.msk [vmem:[#allocation2 + $0x71] sm:$0x1] %vm296, %v354
    %398 = vst.msk [vmem:[#allocation2 + $0x89] sm:$0x1] %vm296, %v356
    %399 = vst.msk [vmem:[#allocation2 + $0xa1] sm:$0x1] %vm296, %v358
    %400 = vst.msk [vmem:[#allocation2 + $0xb9] sm:$0x1] %vm296, %v360
    %401 = vst.msk [vmem:[#allocation2 + $0xd1] sm:$0x1] %vm296, %v362
    %402 = vst.msk [vmem:[#allocation2 + $0xe9] sm:$0x1] %vm296, %v364
    %403 = vst.msk [vmem:[#allocation2 + $0x101] sm:$0x1] %vm296, %v366
    %404 = vst.msk [vmem:[#allocation2 + $0x119] sm:$0x1] %vm296, %v368
    %405 = vst.msk [vmem:[#allocation2 + $0x131] sm:$0x1] %vm296, %v370
    %406 = vst.msk [vmem:[#allocation2 + $0x149] sm:$0x1] %vm296, %v372
    %407 = vst.msk [vmem:[#allocation2 + $0x161] sm:$0x1] %vm296, %v374
    %408 = vst.msk [vmem:[#allocation2 + $0x179] sm:$0x1] %vm296, %v376
    %v409 = vld [vmem:[#allocation2] sm:$0xff]
    %v410 = vld [vmem:[#allocation2 + $0x8] sm:$0xff]
    %v411 = vld [vmem:[#allocation2 + $0x10] sm:$0x3]
    %v412 = vld [vmem:[#allocation2 + $0x18] sm:$0xff]
    %v413 = vld [vmem:[#allocation2 + $0x20] sm:$0xff]
    %v414 = vld [vmem:[#allocation2 + $0x28] sm:$0x3]
    %v415 = vld [vmem:[#allocation2 + $0x30] sm:$0xff]
    %v416 = vld [vmem:[#allocation2 + $0x38] sm:$0xff]
    %v417 = vld [vmem:[#allocation2 + $0x40] sm:$0x3]
    %v418 = vld [vmem:[#allocation2 + $0x48] sm:$0xff]
    %v419 = vld [vmem:[#allocation2 + $0x50] sm:$0xff]
    %v420 = vld [vmem:[#allocation2 + $0x58] sm:$0x3]
    %v421 = vld [vmem:[#allocation2 + $0x60] sm:$0xff]
    %v422 = vld [vmem:[#allocation2 + $0x68] sm:$0xff]
    %v423 = vld [vmem:[#allocation2 + $0x70] sm:$0x3]
    %v424 = vld [vmem:[#allocation2 + $0x78] sm:$0xff]
    %v425 = vld [vmem:[#allocation2 + $0x80] sm:$0xff]
    %v426 = vld [vmem:[#allocation2 + $0x88] sm:$0x3]
    %v427 = vld [vmem:[#allocation2 + $0x90] sm:$0xff]
    %v428 = vld [vmem:[#allocation2 + $0x98] sm:$0xff]
    %v429 = vld [vmem:[#allocation2 + $0xa0] sm:$0x3]
    %v430 = vld [vmem:[#allocation2 + $0xa8] sm:$0xff]
    %v431 = vld [vmem:[#allocation2 + $0xb0] sm:$0xff]
    %v432 = vld [vmem:[#allocation2 + $0xb8] sm:$0x3]
    %v433 = vld [vmem:[#allocation2 + $0xc0] sm:$0xff]
    %v434 = vld [vmem:[#allocation2 + $0xc8] sm:$0xff]
    %v435 = vld [vmem:[#allocation2 + $0xd0] sm:$0x3]
    %v436 = vld [vmem:[#allocation2 + $0xd8] sm:$0xff]
    %v437 = vld [vmem:[#allocation2 + $0xe0] sm:$0xff]
    %v438 = vld [vmem:[#allocation2 + $0xe8] sm:$0x3]
    %v439 = vld [vmem:[#allocation2 + $0xf0] sm:$0xff]
    %v440 = vld [vmem:[#allocation2 + $0xf8] sm:$0xff]
    %v441 = vld [vmem:[#allocation2 + $0x100] sm:$0x3]
    %v442 = vld [vmem:[#allocation2 + $0x108] sm:$0xff]
    %v443 = vld [vmem:[#allocation2 + $0x110] sm:$0xff]
    %v444 = vld [vmem:[#allocation2 + $0x118] sm:$0x3]
    %v445 = vld [vmem:[#allocation2 + $0x120] sm:$0xff]
    %v446 = vld [vmem:[#allocation2 + $0x128] sm:$0xff]
    %v447 = vld [vmem:[#allocation2 + $0x130] sm:$0x3]
    %v448 = vld [vmem:[#allocation2 + $0x138] sm:$0xff]
    %v449 = vld [vmem:[#allocation2 + $0x140] sm:$0xff]
    %v450 = vld [vmem:[#allocation2 + $0x148] sm:$0x3]
    %v451 = vld [vmem:[#allocation2 + $0x150] sm:$0xff]
    %v452 = vld [vmem:[#allocation2 + $0x158] sm:$0xff]
    %v453 = vld [vmem:[#allocation2 + $0x160] sm:$0x3]
    %v454 = vld [vmem:[#allocation2 + $0x168] sm:$0xff]
    %v455 = vld [vmem:[#allocation2 + $0x170] sm:$0xff]
    %v456 = vld [vmem:[#allocation2 + $0x178] sm:$0x3]
    %505 = vrot.lane.b32.xlu0 %v409, 126
    %v506 = vpop.permute.xlu0 %505
    %507 = vrot.lane.b32.xlu0 %v410, 126
    %v508 = vpop.permute.xlu0 %507
    %509 = vrot.lane.b32.xlu0 %v411, 126
    %v510 = vpop.permute.xlu0 %509
    %511 = vrot.lane.b32.xlu0 %v412, 126
    %v512 = vpop.permute.xlu0 %511
    %513 = vrot.lane.b32.xlu0 %v413, 126
    %v514 = vpop.permute.xlu0 %513
    %515 = vrot.lane.b32.xlu0 %v414, 126
    %v516 = vpop.permute.xlu0 %515
    %517 = vrot.lane.b32.xlu0 %v415, 126
    %v518 = vpop.permute.xlu0 %517
    %519 = vrot.lane.b32.xlu0 %v416, 126
    %v520 = vpop.permute.xlu0 %519
    %521 = vrot.lane.b32.xlu0 %v417, 126
    %v522 = vpop.permute.xlu0 %521
    %523 = vrot.lane.b32.xlu0 %v418, 126
    %v524 = vpop.permute.xlu0 %523
    %525 = vrot.lane.b32.xlu0 %v419, 126
    %v526 = vpop.permute.xlu0 %525
    %527 = vrot.lane.b32.xlu0 %v420, 126
    %v528 = vpop.permute.xlu0 %527
    %529 = vrot.lane.b32.xlu0 %v421, 126
    %v530 = vpop.permute.xlu0 %529
    %531 = vrot.lane.b32.xlu0 %v422, 126
    %v532 = vpop.permute.xlu0 %531
    %533 = vrot.lane.b32.xlu0 %v423, 126
    %v534 = vpop.permute.xlu0 %533
    %535 = vrot.lane.b32.xlu0 %v424, 126
    %v536 = vpop.permute.xlu0 %535
    %537 = vrot.lane.b32.xlu0 %v425, 126
    %v538 = vpop.permute.xlu0 %537
    %539 = vrot.lane.b32.xlu0 %v426, 126
    %v540 = vpop.permute.xlu0 %539
    %541 = vrot.lane.b32.xlu0 %v427, 126
    %v542 = vpop.permute.xlu0 %541
    %543 = vrot.lane.b32.xlu0 %v428, 126
    %v544 = vpop.permute.xlu0 %543
    %545 = vrot.lane.b32.xlu0 %v429, 126
    %v546 = vpop.permute.xlu0 %545
    %547 = vrot.lane.b32.xlu0 %v430, 126
    %v548 = vpop.permute.xlu0 %547
    %549 = vrot.lane.b32.xlu0 %v431, 126
    %v550 = vpop.permute.xlu0 %549
    %551 = vrot.lane.b32.xlu0 %v432, 126
    %v552 = vpop.permute.xlu0 %551
    %553 = vrot.lane.b32.xlu0 %v433, 126
    %v554 = vpop.permute.xlu0 %553
    %555 = vrot.lane.b32.xlu0 %v434, 126
    %v556 = vpop.permute.xlu0 %555
    %557 = vrot.lane.b32.xlu0 %v435, 126
    %v558 = vpop.permute.xlu0 %557
    %559 = vrot.lane.b32.xlu0 %v436, 126
    %v560 = vpop.permute.xlu0 %559
    %561 = vrot.lane.b32.xlu0 %v437, 126
    %v562 = vpop.permute.xlu0 %561
    %563 = vrot.lane.b32.xlu0 %v438, 126
    %v564 = vpop.permute.xlu0 %563
    %565 = vrot.lane.b32.xlu0 %v439, 126
    %v566 = vpop.permute.xlu0 %565
    %567 = vrot.lane.b32.xlu0 %v440, 126
    %v568 = vpop.permute.xlu0 %567
    %569 = vrot.lane.b32.xlu0 %v441, 126
    %v570 = vpop.permute.xlu0 %569
    %571 = vrot.lane.b32.xlu0 %v442, 126
    %v572 = vpop.permute.xlu0 %571
    %573 = vrot.lane.b32.xlu0 %v443, 126
    %v574 = vpop.permute.xlu0 %573
    %575 = vrot.lane.b32.xlu0 %v444, 126
    %v576 = vpop.permute.xlu0 %575
    %577 = vrot.lane.b32.xlu0 %v445, 126
    %v578 = vpop.permute.xlu0 %577
    %579 = vrot.lane.b32.xlu0 %v446, 126
    %v580 = vpop.permute.xlu0 %579
    %581 = vrot.lane.b32.xlu0 %v447, 126
    %v582 = vpop.permute.xlu0 %581
    %583 = vrot.lane.b32.xlu0 %v448, 126
    %v584 = vpop.permute.xlu0 %583
    %585 = vrot.lane.b32.xlu0 %v449, 126
    %v586 = vpop.permute.xlu0 %585
    %587 = vrot.lane.b32.xlu0 %v450, 126
    %v588 = vpop.permute.xlu0 %587
    %589 = vrot.lane.b32.xlu0 %v451, 126
    %v590 = vpop.permute.xlu0 %589
    %591 = vrot.lane.b32.xlu0 %v452, 126
    %v592 = vpop.permute.xlu0 %591
    %593 = vrot.lane.b32.xlu0 %v453, 126
    %v594 = vpop.permute.xlu0 %593
    %595 = vrot.lane.b32.xlu0 %v454, 126
    %v596 = vpop.permute.xlu0 %595
    %597 = vrot.lane.b32.xlu0 %v455, 126
    %v598 = vpop.permute.xlu0 %597
    %599 = vrot.lane.b32.xlu0 %v456, 126
    %v600 = vpop.permute.xlu0 %599
    %vm649 = vcmask 7168
    %650 = vst.msk [vmem:[#allocation2] sm:$0xff] %vm649, %v506
    %651 = vst.msk [vmem:[#allocation2 + $0x8] sm:$0xff] %vm649, %v508
    %vm652 = vcmask 1024
    %653 = vst.msk [vmem:[#allocation2 + $0x10] sm:$0x3] %vm652, %v510
    %654 = vst.msk [vmem:[#allocation2 + $0x18] sm:$0xff] %vm649, %v512
    %655 = vst.msk [vmem:[#allocation2 + $0x20] sm:$0xff] %vm649, %v514
    %656 = vst.msk [vmem:[#allocation2 + $0x28] sm:$0x3] %vm652, %v516
    %657 = vst.msk [vmem:[#allocation2 + $0x30] sm:$0xff] %vm649, %v518
    %658 = vst.msk [vmem:[#allocation2 + $0x38] sm:$0xff] %vm649, %v520
    %659 = vst.msk [vmem:[#allocation2 + $0x40] sm:$0x3] %vm652, %v522
    %660 = vst.msk [vmem:[#allocation2 + $0x48] sm:$0xff] %vm649, %v524
    %661 = vst.msk [vmem:[#allocation2 + $0x50] sm:$0xff] %vm649, %v526
    %662 = vst.msk [vmem:[#allocation2 + $0x58] sm:$0x3] %vm652, %v528
    %663 = vst.msk [vmem:[#allocation2 + $0x60] sm:$0xff] %vm649, %v530
    %664 = vst.msk [vmem:[#allocation2 + $0x68] sm:$0xff] %vm649, %v532
    %665 = vst.msk [vmem:[#allocation2 + $0x70] sm:$0x3] %vm652, %v534
    %666 = vst.msk [vmem:[#allocation2 + $0x78] sm:$0xff] %vm649, %v536
    %667 = vst.msk [vmem:[#allocation2 + $0x80] sm:$0xff] %vm649, %v538
    %668 = vst.msk [vmem:[#allocation2 + $0x88] sm:$0x3] %vm652, %v540
    %669 = vst.msk [vmem:[#allocation2 + $0x90] sm:$0xff] %vm649, %v542
    %670 = vst.msk [vmem:[#allocation2 + $0x98] sm:$0xff] %vm649, %v544
    %671 = vst.msk [vmem:[#allocation2 + $0xa0] sm:$0x3] %vm652, %v546
    %672 = vst.msk [vmem:[#allocation2 + $0xa8] sm:$0xff] %vm649, %v548
    %673 = vst.msk [vmem:[#allocation2 + $0xb0] sm:$0xff] %vm649, %v550
    %674 = vst.msk [vmem:[#allocation2 + $0xb8] sm:$0x3] %vm652, %v552
    %675 = vst.msk [vmem:[#allocation2 + $0xc0] sm:$0xff] %vm649, %v554
    %676 = vst.msk [vmem:[#allocation2 + $0xc8] sm:$0xff] %vm649, %v556
    %677 = vst.msk [vmem:[#allocation2 + $0xd0] sm:$0x3] %vm652, %v558
    %678 = vst.msk [vmem:[#allocation2 + $0xd8] sm:$0xff] %vm649, %v560
    %679 = vst.msk [vmem:[#allocation2 + $0xe0] sm:$0xff] %vm649, %v562
    %680 = vst.msk [vmem:[#allocation2 + $0xe8] sm:$0x3] %vm652, %v564
    %681 = vst.msk [vmem:[#allocation2 + $0xf0] sm:$0xff] %vm649, %v566
    %682 = vst.msk [vmem:[#allocation2 + $0xf8] sm:$0xff] %vm649, %v568
    %683 = vst.msk [vmem:[#allocation2 + $0x100] sm:$0x3] %vm652, %v570
    %684 = vst.msk [vmem:[#allocation2 + $0x108] sm:$0xff] %vm649, %v572
    %685 = vst.msk [vmem:[#allocation2 + $0x110] sm:$0xff] %vm649, %v574
    %686 = vst.msk [vmem:[#allocation2 + $0x118] sm:$0x3] %vm652, %v576
    %687 = vst.msk [vmem:[#allocation2 + $0x120] sm:$0xff] %vm649, %v578
    %688 = vst.msk [vmem:[#allocation2 + $0x128] sm:$0xff] %vm649, %v580
    %689 = vst.msk [vmem:[#allocation2 + $0x130] sm:$0x3] %vm652, %v582
    %690 = vst.msk [vmem:[#allocation2 + $0x138] sm:$0xff] %vm649, %v584
    %691 = vst.msk [vmem:[#allocation2 + $0x140] sm:$0xff] %vm649, %v586
    %692 = vst.msk [vmem:[#allocation2 + $0x148] sm:$0x3] %vm652, %v588
    %693 = vst.msk [vmem:[#allocation2 + $0x150] sm:$0xff] %vm649, %v590
    %694 = vst.msk [vmem:[#allocation2 + $0x158] sm:$0xff] %vm649, %v592
    %695 = vst.msk [vmem:[#allocation2 + $0x160] sm:$0x3] %vm652, %v594
    %696 = vst.msk [vmem:[#allocation2 + $0x168] sm:$0xff] %vm649, %v596
    %697 = vst.msk [vmem:[#allocation2 + $0x170] sm:$0xff] %vm649, %v598
    %698 = vst.msk [vmem:[#allocation2 + $0x178] sm:$0x3] %vm652, %v600
    %v699 = vld [vmem:[#allocation2] sm:$0xff]
    %v700 = vld [vmem:[#allocation2 + $0x8] sm:$0xff]
    %v701 = vld [vmem:[#allocation2 + $0x10] sm:$0x3]
    %v702 = vld [vmem:[#allocation2 + $0x18] sm:$0xff]
    %v703 = vld [vmem:[#allocation2 + $0x20] sm:$0xff]
    %v704 = vld [vmem:[#allocation2 + $0x28] sm:$0x3]
    %v705 = vld [vmem:[#allocation2 + $0x30] sm:$0xff]
    %v706 = vld [vmem:[#allocation2 + $0x38] sm:$0xff]
    %v707 = vld [vmem:[#allocation2 + $0x40] sm:$0x3]
    %v708 = vld [vmem:[#allocation2 + $0x48] sm:$0xff]
    %v709 = vld [vmem:[#allocation2 + $0x50] sm:$0xff]
    %v710 = vld [vmem:[#allocation2 + $0x58] sm:$0x3]
    %v711 = vld [vmem:[#allocation2 + $0x60] sm:$0xff]
    %v712 = vld [vmem:[#allocation2 + $0x68] sm:$0xff]
    %v713 = vld [vmem:[#allocation2 + $0x70] sm:$0x3]
    %v714 = vld [vmem:[#allocation2 + $0x78] sm:$0xff]
    %v715 = vld [vmem:[#allocation2 + $0x80] sm:$0xff]
    %v716 = vld [vmem:[#allocation2 + $0x88] sm:$0x3]
    %v717 = vld [vmem:[#allocation2 + $0x90] sm:$0xff]
    %v718 = vld [vmem:[#allocation2 + $0x98] sm:$0xff]
    %v719 = vld [vmem:[#allocation2 + $0xa0] sm:$0x3]
    %v720 = vld [vmem:[#allocation2 + $0xa8] sm:$0xff]
    %v721 = vld [vmem:[#allocation2 + $0xb0] sm:$0xff]
    %v722 = vld [vmem:[#allocation2 + $0xb8] sm:$0x3]
    %v723 = vld [vmem:[#allocation2 + $0xc0] sm:$0xff]
    %v724 = vld [vmem:[#allocation2 + $0xc8] sm:$0xff]
    %v725 = vld [vmem:[#allocation2 + $0xd0] sm:$0x3]
    %v726 = vld [vmem:[#allocation2 + $0xd8] sm:$0xff]
    %v727 = vld [vmem:[#allocation2 + $0xe0] sm:$0xff]
    %v728 = vld [vmem:[#allocation2 + $0xe8] sm:$0x3]
    %v729 = vld [vmem:[#allocation2 + $0xf0] sm:$0xff]
    %v730 = vld [vmem:[#allocation2 + $0xf8] sm:$0xff]
    %v731 = vld [vmem:[#allocation2 + $0x100] sm:$0x3]
    %v732 = vld [vmem:[#allocation2 + $0x108] sm:$0xff]
    %v733 = vld [vmem:[#allocation2 + $0x110] sm:$0xff]
    %v734 = vld [vmem:[#allocation2 + $0x118] sm:$0x3]
    %v735 = vld [vmem:[#allocation2 + $0x120] sm:$0xff]
    %v736 = vld [vmem:[#allocation2 + $0x128] sm:$0xff]
    %v737 = vld [vmem:[#allocation2 + $0x130] sm:$0x3]
    %v738 = vld [vmem:[#allocation2 + $0x138] sm:$0xff]
    %v739 = vld [vmem:[#allocation2 + $0x140] sm:$0xff]
    %v740 = vld [vmem:[#allocation2 + $0x148] sm:$0x3]
    %v741 = vld [vmem:[#allocation2 + $0x150] sm:$0xff]
    %v742 = vld [vmem:[#allocation2 + $0x158] sm:$0xff]
    %v743 = vld [vmem:[#allocation2 + $0x160] sm:$0x3]
    %v744 = vld [vmem:[#allocation2 + $0x168] sm:$0xff]
    %v745 = vld [vmem:[#allocation2 + $0x170] sm:$0xff]
    %v746 = vld [vmem:[#allocation2 + $0x178] sm:$0x3]
    %795 = vrot.lane.b32.xlu0 %v699, 2
    %v796 = vpop.permute.xlu0 %795
    %797 = vrot.lane.b32.xlu0 %v700, 2
    %v798 = vpop.permute.xlu0 %797
    %799 = vrot.lane.b32.xlu0 %v701, 2
    %v800 = vpop.permute.xlu0 %799
    %801 = vrot.lane.b32.xlu0 %v702, 2
    %v802 = vpop.permute.xlu0 %801
    %803 = vrot.lane.b32.xlu0 %v703, 2
    %v804 = vpop.permute.xlu0 %803
    %805 = vrot.lane.b32.xlu0 %v704, 2
    %v806 = vpop.permute.xlu0 %805
    %807 = vrot.lane.b32.xlu0 %v705, 2
    %v808 = vpop.permute.xlu0 %807
    %809 = vrot.lane.b32.xlu0 %v706, 2
    %v810 = vpop.permute.xlu0 %809
    %811 = vrot.lane.b32.xlu0 %v707, 2
    %v812 = vpop.permute.xlu0 %811
    %813 = vrot.lane.b32.xlu0 %v708, 2
    %v814 = vpop.permute.xlu0 %813
    %815 = vrot.lane.b32.xlu0 %v709, 2
    %v816 = vpop.permute.xlu0 %815
    %817 = vrot.lane.b32.xlu0 %v710, 2
    %v818 = vpop.permute.xlu0 %817
    %819 = vrot.lane.b32.xlu0 %v711, 2
    %v820 = vpop.permute.xlu0 %819
    %821 = vrot.lane.b32.xlu0 %v712, 2
    %v822 = vpop.permute.xlu0 %821
    %823 = vrot.lane.b32.xlu0 %v713, 2
    %v824 = vpop.permute.xlu0 %823
    %825 = vrot.lane.b32.xlu0 %v714, 2
    %v826 = vpop.permute.xlu0 %825
    %827 = vrot.lane.b32.xlu0 %v715, 2
    %v828 = vpop.permute.xlu0 %827
    %829 = vrot.lane.b32.xlu0 %v716, 2
    %v830 = vpop.permute.xlu0 %829
    %831 = vrot.lane.b32.xlu0 %v717, 2
    %v832 = vpop.permute.xlu0 %831
    %833 = vrot.lane.b32.xlu0 %v718, 2
    %v834 = vpop.permute.xlu0 %833
    %835 = vrot.lane.b32.xlu0 %v719, 2
    %v836 = vpop.permute.xlu0 %835
    %837 = vrot.lane.b32.xlu0 %v720, 2
    %v838 = vpop.permute.xlu0 %837
    %839 = vrot.lane.b32.xlu0 %v721, 2
    %v840 = vpop.permute.xlu0 %839
    %841 = vrot.lane.b32.xlu0 %v722, 2
    %v842 = vpop.permute.xlu0 %841
    %843 = vrot.lane.b32.xlu0 %v723, 2
    %v844 = vpop.permute.xlu0 %843
    %845 = vrot.lane.b32.xlu0 %v724, 2
    %v846 = vpop.permute.xlu0 %845
    %847 = vrot.lane.b32.xlu0 %v725, 2
    %v848 = vpop.permute.xlu0 %847
    %849 = vrot.lane.b32.xlu0 %v726, 2
    %v850 = vpop.permute.xlu0 %849
    %851 = vrot.lane.b32.xlu0 %v727, 2
    %v852 = vpop.permute.xlu0 %851
    %853 = vrot.lane.b32.xlu0 %v728, 2
    %v854 = vpop.permute.xlu0 %853
    %855 = vrot.lane.b32.xlu0 %v729, 2
    %v856 = vpop.permute.xlu0 %855
    %857 = vrot.lane.b32.xlu0 %v730, 2
    %v858 = vpop.permute.xlu0 %857
    %859 = vrot.lane.b32.xlu0 %v731, 2
    %v860 = vpop.permute.xlu0 %859
    %861 = vrot.lane.b32.xlu0 %v732, 2
    %v862 = vpop.permute.xlu0 %861
    %863 = vrot.lane.b32.xlu0 %v733, 2
    %v864 = vpop.permute.xlu0 %863
    %865 = vrot.lane.b32.xlu0 %v734, 2
    %v866 = vpop.permute.xlu0 %865
    %867 = vrot.lane.b32.xlu0 %v735, 2
    %v868 = vpop.permute.xlu0 %867
    %869 = vrot.lane.b32.xlu0 %v736, 2
    %v870 = vpop.permute.xlu0 %869
    %871 = vrot.lane.b32.xlu0 %v737, 2
    %v872 = vpop.permute.xlu0 %871
    %873 = vrot.lane.b32.xlu0 %v738, 2
    %v874 = vpop.permute.xlu0 %873
    %875 = vrot.lane.b32.xlu0 %v739, 2
    %v876 = vpop.permute.xlu0 %875
    %877 = vrot.lane.b32.xlu0 %v740, 2
    %v878 = vpop.permute.xlu0 %877
    %879 = vrot.lane.b32.xlu0 %v741, 2
    %v880 = vpop.permute.xlu0 %879
    %881 = vrot.lane.b32.xlu0 %v742, 2
    %v882 = vpop.permute.xlu0 %881
    %883 = vrot.lane.b32.xlu0 %v743, 2
    %v884 = vpop.permute.xlu0 %883
    %885 = vrot.lane.b32.xlu0 %v744, 2
    %v886 = vpop.permute.xlu0 %885
    %887 = vrot.lane.b32.xlu0 %v745, 2
    %v888 = vpop.permute.xlu0 %887
    %889 = vrot.lane.b32.xlu0 %v746, 2
    %v890 = vpop.permute.xlu0 %889
    %vm939 = vcmask 146568
    %940 = vst.msk [vmem:[#allocation2] sm:$0xff] %vm939, %v796
    %941 = vst.msk [vmem:[#allocation2 + $0x8] sm:$0xff] %vm939, %v798
    %vm942 = vcmask 140424
    %943 = vst.msk [vmem:[#allocation2 + $0x10] sm:$0x3] %vm942, %v800
    %944 = vst.msk [vmem:[#allocation2 + $0x18] sm:$0xff] %vm939, %v802
    %945 = vst.msk [vmem:[#allocation2 + $0x20] sm:$0xff] %vm939, %v804
    %946 = vst.msk [vmem:[#allocation2 + $0x28] sm:$0x3] %vm942, %v806
    %947 = vst.msk [vmem:[#allocation2 + $0x30] sm:$0xff] %vm939, %v808
    %948 = vst.msk [vmem:[#allocation2 + $0x38] sm:$0xff] %vm939, %v810
    %949 = vst.msk [vmem:[#allocation2 + $0x40] sm:$0x3] %vm942, %v812
    %950 = vst.msk [vmem:[#allocation2 + $0x48] sm:$0xff] %vm939, %v814
    %951 = vst.msk [vmem:[#allocation2 + $0x50] sm:$0xff] %vm939, %v816
    %952 = vst.msk [vmem:[#allocation2 + $0x58] sm:$0x3] %vm942, %v818
    %953 = vst.msk [vmem:[#allocation2 + $0x60] sm:$0xff] %vm939, %v820
    %954 = vst.msk [vmem:[#allocation2 + $0x68] sm:$0xff] %vm939, %v822
    %955 = vst.msk [vmem:[#allocation2 + $0x70] sm:$0x3] %vm942, %v824
    %956 = vst.msk [vmem:[#allocation2 + $0x78] sm:$0xff] %vm939, %v826
    %957 = vst.msk [vmem:[#allocation2 + $0x80] sm:$0xff] %vm939, %v828
    %958 = vst.msk [vmem:[#allocation2 + $0x88] sm:$0x3] %vm942, %v830
    %959 = vst.msk [vmem:[#allocation2 + $0x90] sm:$0xff] %vm939, %v832
    %960 = vst.msk [vmem:[#allocation2 + $0x98] sm:$0xff] %vm939, %v834
    %961 = vst.msk [vmem:[#allocation2 + $0xa0] sm:$0x3] %vm942, %v836
    %962 = vst.msk [vmem:[#allocation2 + $0xa8] sm:$0xff] %vm939, %v838
    %963 = vst.msk [vmem:[#allocation2 + $0xb0] sm:$0xff] %vm939, %v840
    %964 = vst.msk [vmem:[#allocation2 + $0xb8] sm:$0x3] %vm942, %v842
    %965 = vst.msk [vmem:[#allocation2 + $0xc0] sm:$0xff] %vm939, %v844
    %966 = vst.msk [vmem:[#allocation2 + $0xc8] sm:$0xff] %vm939, %v846
    %967 = vst.msk [vmem:[#allocation2 + $0xd0] sm:$0x3] %vm942, %v848
    %968 = vst.msk [vmem:[#allocation2 + $0xd8] sm:$0xff] %vm939, %v850
    %969 = vst.msk [vmem:[#allocation2 + $0xe0] sm:$0xff] %vm939, %v852
    %970 = vst.msk [vmem:[#allocation2 + $0xe8] sm:$0x3] %vm942, %v854
    %971 = vst.msk [vmem:[#allocation2 + $0xf0] sm:$0xff] %vm939, %v856
    %972 = vst.msk [vmem:[#allocation2 + $0xf8] sm:$0xff] %vm939, %v858
    %973 = vst.msk [vmem:[#allocation2 + $0x100] sm:$0x3] %vm942, %v860
    %974 = vst.msk [vmem:[#allocation2 + $0x108] sm:$0xff] %vm939, %v862
    %975 = vst.msk [vmem:[#allocation2 + $0x110] sm:$0xff] %vm939, %v864
    %976 = vst.msk [vmem:[#allocation2 + $0x118] sm:$0x3] %vm942, %v866
    %977 = vst.msk [vmem:[#allocation2 + $0x120] sm:$0xff] %vm939, %v868
    %978 = vst.msk [vmem:[#allocation2 + $0x128] sm:$0xff] %vm939, %v870
    %979 = vst.msk [vmem:[#allocation2 + $0x130] sm:$0x3] %vm942, %v872
    %980 = vst.msk [vmem:[#allocation2 + $0x138] sm:$0xff] %vm939, %v874
    %981 = vst.msk [vmem:[#allocation2 + $0x140] sm:$0xff] %vm939, %v876
    %982 = vst.msk [vmem:[#allocation2 + $0x148] sm:$0x3] %vm942, %v878
    %983 = vst.msk [vmem:[#allocation2 + $0x150] sm:$0xff] %vm939, %v880
    %984 = vst.msk [vmem:[#allocation2 + $0x158] sm:$0xff] %vm939, %v882
    %985 = vst.msk [vmem:[#allocation2 + $0x160] sm:$0x3] %vm942, %v884
    %986 = vst.msk [vmem:[#allocation2 + $0x168] sm:$0xff] %vm939, %v886
    %987 = vst.msk [vmem:[#allocation2 + $0x170] sm:$0xff] %vm939, %v888
    %988 = vst.msk [vmem:[#allocation2 + $0x178] sm:$0x3] %vm942, %v890
    %v989 = vld [vmem:[#allocation2] sm:$0xff]
    %v990 = vld [vmem:[#allocation2 + $0x8] sm:$0xff]
    %v991 = vld [vmem:[#allocation2 + $0x18] sm:$0xff]
    %v992 = vld [vmem:[#allocation2 + $0x20] sm:$0xff]
    %v993 = vld [vmem:[#allocation2 + $0x30] sm:$0xff]
    %v994 = vld [vmem:[#allocation2 + $0x38] sm:$0xff]
    %v995 = vld [vmem:[#allocation2 + $0x48] sm:$0xff]
    %v996 = vld [vmem:[#allocation2 + $0x50] sm:$0xff]
    %v997 = vld [vmem:[#allocation2 + $0x60] sm:$0xff]
    %v998 = vld [vmem:[#allocation2 + $0x68] sm:$0xff]
    %v999 = vld [vmem:[#allocation2 + $0x78] sm:$0xff]
    %v1000 = vld [vmem:[#allocation2 + $0x80] sm:$0xff]
    %v1001 = vld [vmem:[#allocation2 + $0x90] sm:$0xff]
    %v1002 = vld [vmem:[#allocation2 + $0x98] sm:$0xff]
    %v1003 = vld [vmem:[#allocation2 + $0xa8] sm:$0xff]
    %v1004 = vld [vmem:[#allocation2 + $0xb0] sm:$0xff]
    %v1005 = vld [vmem:[#allocation2 + $0xc0] sm:$0xff]
    %v1006 = vld [vmem:[#allocation2 + $0xc8] sm:$0xff]
    %v1007 = vld [vmem:[#allocation2 + $0xd8] sm:$0xff]
    %v1008 = vld [vmem:[#allocation2 + $0xe0] sm:$0xff]
    %v1009 = vld [vmem:[#allocation2 + $0xf0] sm:$0xff]
    %v1010 = vld [vmem:[#allocation2 + $0xf8] sm:$0xff]
    %v1011 = vld [vmem:[#allocation2 + $0x108] sm:$0xff]
    %v1012 = vld [vmem:[#allocation2 + $0x110] sm:$0xff]
    %v1013 = vld [vmem:[#allocation2 + $0x120] sm:$0xff]
    %v1014 = vld [vmem:[#allocation2 + $0x128] sm:$0xff]
    %v1015 = vld [vmem:[#allocation2 + $0x138] sm:$0xff]
    %v1016 = vld [vmem:[#allocation2 + $0x140] sm:$0xff]
    %v1017 = vld [vmem:[#allocation2 + $0x150] sm:$0xff]
    %v1018 = vld [vmem:[#allocation2 + $0x158] sm:$0xff]
    %v1019 = vld [vmem:[#allocation2 + $0x168] sm:$0xff]
    %v1020 = vld [vmem:[#allocation2 + $0x170] sm:$0xff]
    %v1021 = vld [vmem:[#allocation2 + $0x1] sm:$0xff]
    %v1022 = vld [vmem:[#allocation2 + $0x9] sm:$0xff]
    %v1023 = vld [vmem:[#allocation2 + $0x19] sm:$0xff]
    %v1024 = vld [vmem:[#allocation2 + $0x21] sm:$0xff]
    %v1025 = vld [vmem:[#allocation2 + $0x31] sm:$0xff]
    %v1026 = vld [vmem:[#allocation2 + $0x39] sm:$0xff]
    %v1027 = vld [vmem:[#allocation2 + $0x49] sm:$0xff]
    %v1028 = vld [vmem:[#allocation2 + $0x51] sm:$0xff]
    %v1029 = vld [vmem:[#allocation2 + $0x61] sm:$0xff]
    %v1030 = vld [vmem:[#allocation2 + $0x69] sm:$0xff]
    %v1031 = vld [vmem:[#allocation2 + $0x79] sm:$0xff]
    %v1032 = vld [vmem:[#allocation2 + $0x81] sm:$0xff]
    %v1033 = vld [vmem:[#allocation2 + $0x91] sm:$0xff]
    %v1034 = vld [vmem:[#allocation2 + $0x99] sm:$0xff]
    %v1035 = vld [vmem:[#allocation2 + $0xa9] sm:$0xff]
    %v1036 = vld [vmem:[#allocation2 + $0xb1] sm:$0xff]
    %v1037 = vld [vmem:[#allocation2 + $0xc1] sm:$0xff]
    %v1038 = vld [vmem:[#allocation2 + $0xc9] sm:$0xff]
    %v1039 = vld [vmem:[#allocation2 + $0xd9] sm:$0xff]
    %v1040 = vld [vmem:[#allocation2 + $0xe1] sm:$0xff]
    %v1041 = vld [vmem:[#allocation2 + $0xf1] sm:$0xff]
    %v1042 = vld [vmem:[#allocation2 + $0xf9] sm:$0xff]
    %v1043 = vld [vmem:[#allocation2 + $0x109] sm:$0xff]
    %v1044 = vld [vmem:[#allocation2 + $0x111] sm:$0xff]
    %v1045 = vld [vmem:[#allocation2 + $0x121] sm:$0xff]
    %v1046 = vld [vmem:[#allocation2 + $0x129] sm:$0xff]
    %v1047 = vld [vmem:[#allocation2 + $0x139] sm:$0xff]
    %v1048 = vld [vmem:[#allocation2 + $0x141] sm:$0xff]
    %v1049 = vld [vmem:[#allocation2 + $0x151] sm:$0xff]
    %v1050 = vld [vmem:[#allocation2 + $0x159] sm:$0xff]
    %v1051 = vld [vmem:[#allocation2 + $0x169] sm:$0xff]
    %v1052 = vld [vmem:[#allocation2 + $0x171] sm:$0xff]
    %v1053 = vmax.f32 %v989, %v1021
    %v1054 = vmax.f32 %v990, %v1022
    %v1055 = vmax.f32 %v991, %v1023
    %v1056 = vmax.f32 %v992, %v1024
    %v1057 = vmax.f32 %v993, %v1025
    %v1058 = vmax.f32 %v994, %v1026
    %v1059 = vmax.f32 %v995, %v1027
    %v1060 = vmax.f32 %v996, %v1028
    %v1061 = vmax.f32 %v997, %v1029
    %v1062 = vmax.f32 %v998, %v1030
    %v1063 = vmax.f32 %v999, %v1031
    %v1064 = vmax.f32 %v1000, %v1032
    %v1065 = vmax.f32 %v1001, %v1033
    %v1066 = vmax.f32 %v1002, %v1034
    %v1067 = vmax.f32 %v1003, %v1035
    %v1068 = vmax.f32 %v1004, %v1036
    %v1069 = vmax.f32 %v1005, %v1037
    %v1070 = vmax.f32 %v1006, %v1038
    %v1071 = vmax.f32 %v1007, %v1039
    %v1072 = vmax.f32 %v1008, %v1040
    %v1073 = vmax.f32 %v1009, %v1041
    %v1074 = vmax.f32 %v1010, %v1042
    %v1075 = vmax.f32 %v1011, %v1043
    %v1076 = vmax.f32 %v1012, %v1044
    %v1077 = vmax.f32 %v1013, %v1045
    %v1078 = vmax.f32 %v1014, %v1046
    %v1079 = vmax.f32 %v1015, %v1047
    %v1080 = vmax.f32 %v1016, %v1048
    %v1081 = vmax.f32 %v1017, %v1049
    %v1082 = vmax.f32 %v1018, %v1050
    %v1083 = vmax.f32 %v1019, %v1051
    %v1084 = vmax.f32 %v1020, %v1052
    %v1085 = vld [vmem:[#allocation2 + $0x2] sm:$0xff]
    %v1086 = vld [vmem:[#allocation2 + $0xa] sm:$0xff]
    %v1087 = vld [vmem:[#allocation2 + $0x1a] sm:$0xff]
    %v1088 = vld [vmem:[#allocation2 + $0x22] sm:$0xff]
    %v1089 = vld [vmem:[#allocation2 + $0x32] sm:$0xff]
    %v1090 = vld [vmem:[#allocation2 + $0x3a] sm:$0xff]
    %v1091 = vld [vmem:[#allocation2 + $0x4a] sm:$0xff]
    %v1092 = vld [vmem:[#allocation2 + $0x52] sm:$0xff]
    %v1093 = vld [vmem:[#allocation2 + $0x62] sm:$0xff]
    %v1094 = vld [vmem:[#allocation2 + $0x6a] sm:$0xff]
    %v1095 = vld [vmem:[#allocation2 + $0x7a] sm:$0xff]
    %v1096 = vld [vmem:[#allocation2 + $0x82] sm:$0xff]
    %v1097 = vld [vmem:[#allocation2 + $0x92] sm:$0xff]
    %v1098 = vld [vmem:[#allocation2 + $0x9a] sm:$0xff]
    %v1099 = vld [vmem:[#allocation2 + $0xaa] sm:$0xff]
    %v1100 = vld [vmem:[#allocation2 + $0xb2] sm:$0xff]
    %v1101 = vld [vmem:[#allocation2 + $0xc2] sm:$0xff]
    %v1102 = vld [vmem:[#allocation2 + $0xca] sm:$0xff]
    %v1103 = vld [vmem:[#allocation2 + $0xda] sm:$0xff]
    %v1104 = vld [vmem:[#allocation2 + $0xe2] sm:$0xff]
    %v1105 = vld [vmem:[#allocation2 + $0xf2] sm:$0xff]
    %v1106 = vld [vmem:[#allocation2 + $0xfa] sm:$0xff]
    %v1107 = vld [vmem:[#allocation2 + $0x10a] sm:$0xff]
    %v1108 = vld [vmem:[#allocation2 + $0x112] sm:$0xff]
    %v1109 = vld [vmem:[#allocation2 + $0x122] sm:$0xff]
    %v1110 = vld [vmem:[#allocation2 + $0x12a] sm:$0xff]
    %v1111 = vld [vmem:[#allocation2 + $0x13a] sm:$0xff]
    %v1112 = vld [vmem:[#allocation2 + $0x142] sm:$0xff]
    %v1113 = vld [vmem:[#allocation2 + $0x152] sm:$0xff]
    %v1114 = vld [vmem:[#allocation2 + $0x15a] sm:$0xff]
    %v1115 = vld [vmem:[#allocation2 + $0x16a] sm:$0xff]
    %v1116 = vld [vmem:[#allocation2 + $0x172] sm:$0xff]
    %v1117 = vmax.f32 %v1053, %v1085
    %v1118 = vmax.f32 %v1054, %v1086
    %v1119 = vmax.f32 %v1055, %v1087
    %v1120 = vmax.f32 %v1056, %v1088
    %v1121 = vmax.f32 %v1057, %v1089
    %v1122 = vmax.f32 %v1058, %v1090
    %v1123 = vmax.f32 %v1059, %v1091
    %v1124 = vmax.f32 %v1060, %v1092
    %v1125 = vmax.f32 %v1061, %v1093
    %v1126 = vmax.f32 %v1062, %v1094
    %v1127 = vmax.f32 %v1063, %v1095
    %v1128 = vmax.f32 %v1064, %v1096
    %v1129 = vmax.f32 %v1065, %v1097
    %v1130 = vmax.f32 %v1066, %v1098
    %v1131 = vmax.f32 %v1067, %v1099
    %v1132 = vmax.f32 %v1068, %v1100
    %v1133 = vmax.f32 %v1069, %v1101
    %v1134 = vmax.f32 %v1070, %v1102
    %v1135 = vmax.f32 %v1071, %v1103
    %v1136 = vmax.f32 %v1072, %v1104
    %v1137 = vmax.f32 %v1073, %v1105
    %v1138 = vmax.f32 %v1074, %v1106
    %v1139 = vmax.f32 %v1075, %v1107
    %v1140 = vmax.f32 %v1076, %v1108
    %v1141 = vmax.f32 %v1077, %v1109
    %v1142 = vmax.f32 %v1078, %v1110
    %v1143 = vmax.f32 %v1079, %v1111
    %v1144 = vmax.f32 %v1080, %v1112
    %v1145 = vmax.f32 %v1081, %v1113
    %v1146 = vmax.f32 %v1082, %v1114
    %v1147 = vmax.f32 %v1083, %v1115
    %v1148 = vmax.f32 %v1084, %v1116
    %1181 = vrot.lane.b32.xlu0 %v1117, 127
    %v1182 = vpop.permute.xlu0 %1181
    %1183 = vrot.lane.b32.xlu0 %v1118, 127
    %v1184 = vpop.permute.xlu0 %1183
    %1185 = vrot.lane.b32.xlu0 %v1119, 127
    %v1186 = vpop.permute.xlu0 %1185
    %1187 = vrot.lane.b32.xlu0 %v1120, 127
    %v1188 = vpop.permute.xlu0 %1187
    %1189 = vrot.lane.b32.xlu0 %v1121, 127
    %v1190 = vpop.permute.xlu0 %1189
    %1191 = vrot.lane.b32.xlu0 %v1122, 127
    %v1192 = vpop.permute.xlu0 %1191
    %1193 = vrot.lane.b32.xlu0 %v1123, 127
    %v1194 = vpop.permute.xlu0 %1193
    %1195 = vrot.lane.b32.xlu0 %v1124, 127
    %v1196 = vpop.permute.xlu0 %1195
    %1197 = vrot.lane.b32.xlu0 %v1125, 127
    %v1198 = vpop.permute.xlu0 %1197
    %1199 = vrot.lane.b32.xlu0 %v1126, 127
    %v1200 = vpop.permute.xlu0 %1199
    %1201 = vrot.lane.b32.xlu0 %v1127, 127
    %v1202 = vpop.permute.xlu0 %1201
    %1203 = vrot.lane.b32.xlu0 %v1128, 127
    %v1204 = vpop.permute.xlu0 %1203
    %1205 = vrot.lane.b32.xlu0 %v1129, 127
    %v1206 = vpop.permute.xlu0 %1205
    %1207 = vrot.lane.b32.xlu0 %v1130, 127
    %v1208 = vpop.permute.xlu0 %1207
    %1209 = vrot.lane.b32.xlu0 %v1131, 127
    %v1210 = vpop.permute.xlu0 %1209
    %1211 = vrot.lane.b32.xlu0 %v1132, 127
    %v1212 = vpop.permute.xlu0 %1211
    %1213 = vrot.lane.b32.xlu0 %v1133, 127
    %v1214 = vpop.permute.xlu0 %1213
    %1215 = vrot.lane.b32.xlu0 %v1134, 127
    %v1216 = vpop.permute.xlu0 %1215
    %1217 = vrot.lane.b32.xlu0 %v1135, 127
    %v1218 = vpop.permute.xlu0 %1217
    %1219 = vrot.lane.b32.xlu0 %v1136, 127
    %v1220 = vpop.permute.xlu0 %1219
    %1221 = vrot.lane.b32.xlu0 %v1137, 127
    %v1222 = vpop.permute.xlu0 %1221
    %1223 = vrot.lane.b32.xlu0 %v1138, 127
    %v1224 = vpop.permute.xlu0 %1223
    %1225 = vrot.lane.b32.xlu0 %v1139, 127
    %v1226 = vpop.permute.xlu0 %1225
    %1227 = vrot.lane.b32.xlu0 %v1140, 127
    %v1228 = vpop.permute.xlu0 %1227
    %1229 = vrot.lane.b32.xlu0 %v1141, 127
    %v1230 = vpop.permute.xlu0 %1229
    %1231 = vrot.lane.b32.xlu0 %v1142, 127
    %v1232 = vpop.permute.xlu0 %1231
    %1233 = vrot.lane.b32.xlu0 %v1143, 127
    %v1234 = vpop.permute.xlu0 %1233
    %1235 = vrot.lane.b32.xlu0 %v1144, 127
    %v1236 = vpop.permute.xlu0 %1235
    %1237 = vrot.lane.b32.xlu0 %v1145, 127
    %v1238 = vpop.permute.xlu0 %1237
    %1239 = vrot.lane.b32.xlu0 %v1146, 127
    %v1240 = vpop.permute.xlu0 %1239
    %1241 = vrot.lane.b32.xlu0 %v1147, 127
    %v1242 = vpop.permute.xlu0 %1241
    %1243 = vrot.lane.b32.xlu0 %v1148, 127
    %v1244 = vpop.permute.xlu0 %1243
    %v1277 = vmax.f32 %v1117, %v1182
    %v1278 = vmax.f32 %v1118, %v1184
    %v1279 = vmax.f32 %v1119, %v1186
    %v1280 = vmax.f32 %v1120, %v1188
    %v1281 = vmax.f32 %v1121, %v1190
    %v1282 = vmax.f32 %v1122, %v1192
    %v1283 = vmax.f32 %v1123, %v1194
    %v1284 = vmax.f32 %v1124, %v1196
    %v1285 = vmax.f32 %v1125, %v1198
    %v1286 = vmax.f32 %v1126, %v1200
    %v1287 = vmax.f32 %v1127, %v1202
    %v1288 = vmax.f32 %v1128, %v1204
    %v1289 = vmax.f32 %v1129, %v1206
    %v1290 = vmax.f32 %v1130, %v1208
    %v1291 = vmax.f32 %v1131, %v1210
    %v1292 = vmax.f32 %v1132, %v1212
    %v1293 = vmax.f32 %v1133, %v1214
    %v1294 = vmax.f32 %v1134, %v1216
    %v1295 = vmax.f32 %v1135, %v1218
    %v1296 = vmax.f32 %v1136, %v1220
    %v1297 = vmax.f32 %v1137, %v1222
    %v1298 = vmax.f32 %v1138, %v1224
    %v1299 = vmax.f32 %v1139, %v1226
    %v1300 = vmax.f32 %v1140, %v1228
    %v1301 = vmax.f32 %v1141, %v1230
    %v1302 = vmax.f32 %v1142, %v1232
    %v1303 = vmax.f32 %v1143, %v1234
    %v1304 = vmax.f32 %v1144, %v1236
    %v1305 = vmax.f32 %v1145, %v1238
    %v1306 = vmax.f32 %v1146, %v1240
    %v1307 = vmax.f32 %v1147, %v1242
    %v1308 = vmax.f32 %v1148, %v1244
    %1309 = vrot.lane.b32.xlu0 %v1117, 126
    %v1310 = vpop.permute.xlu0 %1309
    %1311 = vrot.lane.b32.xlu0 %v1118, 126
    %v1312 = vpop.permute.xlu0 %1311
    %1313 = vrot.lane.b32.xlu0 %v1119, 126
    %v1314 = vpop.permute.xlu0 %1313
    %1315 = vrot.lane.b32.xlu0 %v1120, 126
    %v1316 = vpop.permute.xlu0 %1315
    %1317 = vrot.lane.b32.xlu0 %v1121, 126
    %v1318 = vpop.permute.xlu0 %1317
    %1319 = vrot.lane.b32.xlu0 %v1122, 126
    %v1320 = vpop.permute.xlu0 %1319
    %1321 = vrot.lane.b32.xlu0 %v1123, 126
    %v1322 = vpop.permute.xlu0 %1321
    %1323 = vrot.lane.b32.xlu0 %v1124, 126
    %v1324 = vpop.permute.xlu0 %1323
    %1325 = vrot.lane.b32.xlu0 %v1125, 126
    %v1326 = vpop.permute.xlu0 %1325
    %1327 = vrot.lane.b32.xlu0 %v1126, 126
    %v1328 = vpop.permute.xlu0 %1327
    %1329 = vrot.lane.b32.xlu0 %v1127, 126
    %v1330 = vpop.permute.xlu0 %1329
    %1331 = vrot.lane.b32.xlu0 %v1128, 126
    %v1332 = vpop.permute.xlu0 %1331
    %1333 = vrot.lane.b32.xlu0 %v1129, 126
    %v1334 = vpop.permute.xlu0 %1333
    %1335 = vrot.lane.b32.xlu0 %v1130, 126
    %v1336 = vpop.permute.xlu0 %1335
    %1337 = vrot.lane.b32.xlu0 %v1131, 126
    %v1338 = vpop.permute.xlu0 %1337
    %1339 = vrot.lane.b32.xlu0 %v1132, 126
    %v1340 = vpop.permute.xlu0 %1339
    %1341 = vrot.lane.b32.xlu0 %v1133, 126
    %v1342 = vpop.permute.xlu0 %1341
    %1343 = vrot.lane.b32.xlu0 %v1134, 126
    %v1344 = vpop.permute.xlu0 %1343
    %1345 = vrot.lane.b32.xlu0 %v1135, 126
    %v1346 = vpop.permute.xlu0 %1345
    %1347 = vrot.lane.b32.xlu0 %v1136, 126
    %v1348 = vpop.permute.xlu0 %1347
    %1349 = vrot.lane.b32.xlu0 %v1137, 126
    %v1350 = vpop.permute.xlu0 %1349
    %1351 = vrot.lane.b32.xlu0 %v1138, 126
    %v1352 = vpop.permute.xlu0 %1351
    %1353 = vrot.lane.b32.xlu0 %v1139, 126
    %v1354 = vpop.permute.xlu0 %1353
    %1355 = vrot.lane.b32.xlu0 %v1140, 126
    %v1356 = vpop.permute.xlu0 %1355
    %1357 = vrot.lane.b32.xlu0 %v1141, 126
    %v1358 = vpop.permute.xlu0 %1357
    %1359 = vrot.lane.b32.xlu0 %v1142, 126
    %v1360 = vpop.permute.xlu0 %1359
    %1361 = vrot.lane.b32.xlu0 %v1143, 126
    %v1362 = vpop.permute.xlu0 %1361
    %1363 = vrot.lane.b32.xlu0 %v1144, 126
    %v1364 = vpop.permute.xlu0 %1363
    %1365 = vrot.lane.b32.xlu0 %v1145, 126
    %v1366 = vpop.permute.xlu0 %1365
    %1367 = vrot.lane.b32.xlu0 %v1146, 126
    %v1368 = vpop.permute.xlu0 %1367
    %1369 = vrot.lane.b32.xlu0 %v1147, 126
    %v1370 = vpop.permute.xlu0 %1369
    %1371 = vrot.lane.b32.xlu0 %v1148, 126
    %v1372 = vpop.permute.xlu0 %1371
    %v1405 = vmax.f32 %v1277, %v1310
    %v1406 = vmax.f32 %v1278, %v1312
    %v1407 = vmax.f32 %v1279, %v1314
    %v1408 = vmax.f32 %v1280, %v1316
    %v1409 = vmax.f32 %v1281, %v1318
    %v1410 = vmax.f32 %v1282, %v1320
    %v1411 = vmax.f32 %v1283, %v1322
    %v1412 = vmax.f32 %v1284, %v1324
    %v1413 = vmax.f32 %v1285, %v1326
    %v1414 = vmax.f32 %v1286, %v1328
    %v1415 = vmax.f32 %v1287, %v1330
    %v1416 = vmax.f32 %v1288, %v1332
    %v1417 = vmax.f32 %v1289, %v1334
    %v1418 = vmax.f32 %v1290, %v1336
    %v1419 = vmax.f32 %v1291, %v1338
    %v1420 = vmax.f32 %v1292, %v1340
    %v1421 = vmax.f32 %v1293, %v1342
    %v1422 = vmax.f32 %v1294, %v1344
    %v1423 = vmax.f32 %v1295, %v1346
    %v1424 = vmax.f32 %v1296, %v1348
    %v1425 = vmax.f32 %v1297, %v1350
    %v1426 = vmax.f32 %v1298, %v1352
    %v1427 = vmax.f32 %v1299, %v1354
    %v1428 = vmax.f32 %v1300, %v1356
    %v1429 = vmax.f32 %v1301, %v1358
    %v1430 = vmax.f32 %v1302, %v1360
    %v1431 = vmax.f32 %v1303, %v1362
    %v1432 = vmax.f32 %v1304, %v1364
    %v1433 = vmax.f32 %v1305, %v1366
    %v1434 = vmax.f32 %v1306, %v1368
    %v1435 = vmax.f32 %v1307, %v1370
    %v1436 = vmax.f32 %v1308, %v1372
    %vm1437 = vcmask 130048
    %1438 = vst.msk [vmem:[#allocation6] sm:$0xff] %vm1437, %v1405
    %1439 = vst.msk [vmem:[#allocation6 + $0x8] sm:$0xff] %vm1437, %v1406
    %1440 = vst.msk [vmem:[#allocation6 + $0x10] sm:$0xff] %vm1437, %v1407
    %1441 = vst.msk [vmem:[#allocation6 + $0x18] sm:$0xff] %vm1437, %v1408
    %1442 = vst.msk [vmem:[#allocation6 + $0x20] sm:$0xff] %vm1437, %v1409
    %1443 = vst.msk [vmem:[#allocation6 + $0x28] sm:$0xff] %vm1437, %v1410
    %1444 = vst.msk [vmem:[#allocation6 + $0x30] sm:$0xff] %vm1437, %v1411
    %1445 = vst.msk [vmem:[#allocation6 + $0x38] sm:$0xff] %vm1437, %v1412
    %1446 = vst.msk [vmem:[#allocation6 + $0x40] sm:$0xff] %vm1437, %v1413
    %1447 = vst.msk [vmem:[#allocation6 + $0x48] sm:$0xff] %vm1437, %v1414
    %1448 = vst.msk [vmem:[#allocation6 + $0x50] sm:$0xff] %vm1437, %v1415
    %1449 = vst.msk [vmem:[#allocation6 + $0x58] sm:$0xff] %vm1437, %v1416
    %1450 = vst.msk [vmem:[#allocation6 + $0x60] sm:$0xff] %vm1437, %v1417
    %1451 = vst.msk [vmem:[#allocation6 + $0x68] sm:$0xff] %vm1437, %v1418
    %1452 = vst.msk [vmem:[#allocation6 + $0x70] sm:$0xff] %vm1437, %v1419
    %1453 = vst.msk [vmem:[#allocation6 + $0x78] sm:$0xff] %vm1437, %v1420
    %1454 = vst.msk [vmem:[#allocation6 + $0x80] sm:$0xff] %vm1437, %v1421
    %1455 = vst.msk [vmem:[#allocation6 + $0x88] sm:$0xff] %vm1437, %v1422
    %1456 = vst.msk [vmem:[#allocation6 + $0x90] sm:$0xff] %vm1437, %v1423
    %1457 = vst.msk [vmem:[#allocation6 + $0x98] sm:$0xff] %vm1437, %v1424
    %1458 = vst.msk [vmem:[#allocation6 + $0xa0] sm:$0xff] %vm1437, %v1425
    %1459 = vst.msk [vmem:[#allocation6 + $0xa8] sm:$0xff] %vm1437, %v1426
    %1460 = vst.msk [vmem:[#allocation6 + $0xb0] sm:$0xff] %vm1437, %v1427
    %1461 = vst.msk [vmem:[#allocation6 + $0xb8] sm:$0xff] %vm1437, %v1428
    %1462 = vst.msk [vmem:[#allocation6 + $0xc0] sm:$0xff] %vm1437, %v1429
    %1463 = vst.msk [vmem:[#allocation6 + $0xc8] sm:$0xff] %vm1437, %v1430
    %1464 = vst.msk [vmem:[#allocation6 + $0xd0] sm:$0xff] %vm1437, %v1431
    %1465 = vst.msk [vmem:[#allocation6 + $0xd8] sm:$0xff] %vm1437, %v1432
    %1466 = vst.msk [vmem:[#allocation6 + $0xe0] sm:$0xff] %vm1437, %v1433
    %1467 = vst.msk [vmem:[#allocation6 + $0xe8] sm:$0xff] %vm1437, %v1434
    %1468 = vst.msk [vmem:[#allocation6 + $0xf0] sm:$0xff] %vm1437, %v1435
    %1469 = vst.msk [vmem:[#allocation6 + $0xf8] sm:$0xff] %vm1437, %v1436
    // Predicated region
    $region10: #{tpu_custom_call.1} parent=1 // pred_check
      _
    $region11: #{tpu_custom_call.1} parent=1 // pred_check_branch
      %1471 = sbr.rel (0) target = $region13
    $region12: #{tpu_custom_call.1} parent=1 // pred_region
      %s1473 = ssub.s32 4096, 4096
      %1474 = vsyncadd [#allocation5], %s1473
      %s1475 = sshll.u32 [#allocation6], 4
      %s1476 = int_to_ptr.vmem [resolvable:$true] %s1475
      %1481 = dma.vmem_to_hbm [thread:$0]  %s1476, 4096, %s1, [#allocation5], 128, 128, 8
    $region13: #{tpu_custom_call.1} parent=1 // pred_fallthru
      _
    // Predicated region
    $region14: #{tpu_custom_call.1} parent=1 // pred_check
      _
    $region15: #{tpu_custom_call.1} parent=1 // pred_check_branch
      %1483 = sbr.rel (0) target = $region17
    $region16: #{tpu_custom_call.1} parent=1 // pred_region
      %1484 = dma.done [#allocation5], 4096
    $region17: #{tpu_custom_call.1} parent=1 // pred_fallthru
      _
    %1485 = vsyncpa [#allocation4], 1
    %1486 = vsyncpa [#allocation5], 1

</llo_original>
